<compile_context>
chip_gen: v7x
topology: tpu7x:2x2x1
jax: 0.10.0
libtpu: 0.0.40
codegen_flags: <defaults>
</compile_context>

<pallas_src>
import jax
import jax.numpy as jnp
import numpy as np
from jax.experimental import pallas as pl
from jax.experimental.pallas import tpu as pltpu

# Target ~4 MiB per tile (per-step DMA >> ~0.35us fixed per-step overhead).
_TARGET_TILE_BYTES = 4 * 1024 * 1024


def _identity_kernel(x_ref, o_ref):
    # Pure pass-through of the current tile.
    o_ref[...] = x_ref[...]


def _identity_copy_2d(x2d):
    """Tiled identity copy of a 2-D array. No padding/slicing around the call."""
    rows, cols = x2d.shape
    itemsize = np.dtype(x2d.dtype).itemsize

    # Sublane packing: 8 rows for 32-bit, 16 for bf16, 32 for int8.
    sublane = max(8, 32 // itemsize)

    # Column tiling: take the full last dim when it fits the byte budget
    # (a full-extent block is always layout-legal); otherwise use a
    # lane-dense (multiple of 128) chunk and let pl.cdiv mask the tail.
    if cols * itemsize <= _TARGET_TILE_BYTES or cols <= 128:
        block_cols = cols
    else:
        block_cols = min(cols, _TARGET_TILE_BYTES // itemsize)
        block_cols = max(128, (block_cols // 128) * 128)

    # Row tiling: fill up to ~4 MiB per tile, rows a multiple of the sublane
    # packing; a full-extent row block is used when the array is small.
    rows_budget = max(1, _TARGET_TILE_BYTES // max(1, block_cols * itemsize))
    block_rows = max(sublane, (rows_budget // sublane) * sublane)
    if block_rows >= rows:
        block_rows = rows

    grid = (pl.cdiv(rows, block_rows), pl.cdiv(cols, block_cols))

    return pl.pallas_call(
        _identity_kernel,
        out_shape=jax.ShapeDtypeStruct((rows, cols), x2d.dtype),
        grid=grid,
        in_specs=[pl.BlockSpec((block_rows, block_cols), lambda i, j: (i, j))],
        out_specs=pl.BlockSpec((block_rows, block_cols), lambda i, j: (i, j)),
        input_output_aliases={0: 0},  # output aliases input: no extra buffer
        compiler_params=pltpu.CompilerParams(
            dimension_semantics=("parallel", "parallel"),
            vmem_limit_bytes=48 * 1024 * 1024,
        ),
    )(x2d)


def sequence_pooler_identity(x, channel_numbers=None, stride=None):
    """Forward pass of SequencePoolerIdentity: returns x unchanged.

    channel_numbers / stride are accepted for API parity with the PyTorch
    module but (exactly like the reference) are unused.
    """
    # True optimum for an identity op is zero data movement; short-circuit the
    # degenerate cases and route everything else through the pass-through
    # kernel to demonstrate the Pallas implementation.
    if x.size == 0 or x.ndim == 0:
        return x

    orig_shape = x.shape
    if x.ndim == 1:
        x2d = x.reshape(1, orig_shape[0])
    else:
        # Collapse leading dims; keeps the (fast) last dim -> free reshape.
        x2d = x.reshape(-1, orig_shape[-1])

    out2d = _identity_copy_2d(x2d)
    return out2d.reshape(orig_shape)


if __name__ == "__main__":
    # Small shapes consistent with the module: (N, C, L) sequence tensor.
    channel_numbers = [4, 32, 64]
    stride = [2, 2]
    n, c_in, seq_len = 2, channel_numbers[0], 16

    key = jax.random.PRNGKey(0)
    seq = jax.random.normal(key, (n, c_in, seq_len), jnp.float32)

    out = sequence_pooler_identity(seq, channel_numbers, stride)
    out = jax.block_until_ready(out)

    assert out.shape == seq.shape, (out.shape, seq.shape)
    assert out.dtype == seq.dtype, (out.dtype, seq.dtype)
    # Identity must be bit-exact.
    assert bool(jnp.array_equal(out, seq)), float(jnp.max(jnp.abs(out - seq)))

    # Ragged / non-multiple-of-(8,128) shape exercises the pl.cdiv partial-tile
    # path (no pad, no slice in the wrapper).
    seq2 = jax.random.normal(jax.random.PRNGKey(1), (3, 5, 100), jnp.bfloat16)
    out2 = jax.block_until_ready(sequence_pooler_identity(seq2, channel_numbers, stride))
    assert out2.shape == seq2.shape and out2.dtype == seq2.dtype
    assert bool(jnp.array_equal(out2, seq2))

    print("KERNEL_OK")
</pallas_src>

<mosaic_0001>
module attributes {stable_mosaic.version = 11 : i64} {
  func.func @_identity_kernel(%arg0: i32, %arg1: i32, %arg2: memref<8x16xf32, #tpu.memory_space<vmem>>, %arg3: memref<8x16xf32, #tpu.memory_space<vmem>>) attributes {dimension_semantics = [#tpu.dimension_semantics<parallel>, #tpu.dimension_semantics<parallel>], iteration_bounds = array<i64: 1, 1>, scalar_prefetch = 0 : i64, scratch_operands = 0 : i64, tpu.core_type = #tpu.core_type<tc>, window_params = [{transform_indices = @transform_0, window_bounds = array<i64: 8, 16>}, {transform_indices = @transform_1, window_bounds = array<i64: 8, 16>}]} {
    %c0 = arith.constant 0 : index
    %c0_0 = arith.constant 0 : index
    %0 = vector.load %arg2[%c0, %c0_0] : memref<8x16xf32, #tpu.memory_space<vmem>>, vector<8x16xf32>
    %c0_1 = arith.constant 0 : index
    %c0_2 = arith.constant 0 : index
    %1 = vector.load %arg3[%c0_1, %c0_2] : memref<8x16xf32, #tpu.memory_space<vmem>>, vector<8x16xf32>
    tpu.vector_store %arg3[%c0_1, %c0_2], %0 {strides = array<i32>} : memref<8x16xf32, #tpu.memory_space<vmem>>, vector<8x16xf32>,
    return
  }
  func.func @transform_0(%arg0: i32, %arg1: i32) -> (i32, i32) {
    %c0_i32 = arith.constant 0 : i32
    return %arg0, %arg1 : i32, i32
  }
  func.func @transform_1(%arg0: i32, %arg1: i32) -> (i32, i32) {
    %c0_i32 = arith.constant 0 : i32
    return %arg0, %arg1 : i32, i32
  }
}

</mosaic_0001>

<llo_original>
// kernel: tpu_custom_call.1
$region0: #{tpu_custom_call.1}
  #allocation0 [shape = 'u32[]', space=smem, size = 0x4, offset = 0x4, fixed_abs, tag = 'smem constant byte address 0x4 - core index']
  #allocation1 [shape = 'u32[144,128]{1,0:T(1,128)}', space=vmem, size = 0x12000, scoped, tag = 'internal scratch']
  %s0 = inlined_call_operand.hbm [shape: f32[8,16], index: 0, kind: input, shape index: {}, may-alias: {0,1}]
  %s1 = inlined_call_operand.hbm [shape: f32[8,16], index: 1, kind: output, shape index: {}, may-alias: {0,1}]
  %s2 = sld [smem:[#allocation0]]
  $region18: #{tpu_custom_call.1} parent=0
    _
  %s4 = ssub.s32 1, %s2
  %s5 = scalar_select 0, %s4, %s2
  $region1: #{tpu_custom_call.1} parent=0
    #allocation2 [shape = 'u8[4096]{0}', space=vmem, size = 0x1000, scoped, tag = 'input window, operand 0, single buffered']
    #allocation3 [shape = 's32[1]{0}', space=sflag, size = 0x4, scoped, tag = 'scoped memory for tpu_custom_call.1']
    #allocation4 [shape = 's32[1]{0}', space=sflag, size = 0x4, scoped, tag = 'scoped memory for tpu_custom_call.1']
    #allocation5 [shape = 'u8[4096]{0}', space=vmem, size = 0x1000, scoped, tag = 'output window, operand 0, single buffered']
    %6 = vsyncpa [#allocation3], 0
    %7 = vsyncpa [#allocation4], 0
    // Predicated region
    $region2: #{tpu_custom_call.1} parent=1 // pred_check
      _
    $region3: #{tpu_custom_call.1} parent=1 // pred_check_branch
      %9 = sbr.rel (0) target = $region5
    $region4: #{tpu_custom_call.1} parent=1 // pred_region
      %s11 = ssub.s32 128, 128
      %12 = vsyncadd [#allocation3], %s11
      %s14 = sshll.u32 [#allocation2], 4
      %s15 = int_to_ptr.vmem [resolvable:$true] %s14
      %17 = dma.hbm_to_vmem [thread:$0]  %s0, 128, %s15, [#allocation3]
    $region5: #{tpu_custom_call.1} parent=1 // pred_fallthru
      _
    // Predicated region
    $region6: #{tpu_custom_call.1} parent=1 // pred_check
      _
    $region7: #{tpu_custom_call.1} parent=1 // pred_check_branch
      %19 = sbr.rel (0) target = $region9
    $region8: #{tpu_custom_call.1} parent=1 // pred_region
      %20 = dma.done [#allocation3], 128
    $region9: #{tpu_custom_call.1} parent=1 // pred_fallthru
      _
    %v21 = vld [vmem:[#allocation2] sm:$0xff]
    %vm22 = vcmask 130048
    %23 = vst.msk [vmem:[#allocation5] sm:$0xff] %vm22, %v21
    // Predicated region
    $region10: #{tpu_custom_call.1} parent=1 // pred_check
      _
    $region11: #{tpu_custom_call.1} parent=1 // pred_check_branch
      %25 = sbr.rel (0) target = $region13
    $region12: #{tpu_custom_call.1} parent=1 // pred_region
      %s27 = ssub.s32 128, 128
      %28 = vsyncadd [#allocation4], %s27
      %s30 = sshll.u32 [#allocation5], 4
      %s31 = int_to_ptr.vmem [resolvable:$true] %s30
      %33 = dma.vmem_to_hbm [thread:$0]  %s31, 128, %s1, [#allocation4]
    $region13: #{tpu_custom_call.1} parent=1 // pred_fallthru
      _
    // Predicated region
    $region14: #{tpu_custom_call.1} parent=1 // pred_check
      _
    $region15: #{tpu_custom_call.1} parent=1 // pred_check_branch
      %35 = sbr.rel (0) target = $region17
    $region16: #{tpu_custom_call.1} parent=1 // pred_region
      %36 = dma.done [#allocation4], 128
    $region17: #{tpu_custom_call.1} parent=1 // pred_fallthru
      _
    %37 = vsyncpa [#allocation3], 1
    %38 = vsyncpa [#allocation4], 1

</llo_original>
